<compile_context>
chip_gen: v5e
topology: v5e:2x2
jax: 0.10.0
libtpu: 0.0.40
codegen_flags: <defaults>
</compile_context>

<pallas_src>
import functools

import jax
import jax.numpy as jnp
from jax.experimental import pallas as pl
from jax.experimental.pallas import tpu as pltpu


def _fused_mlp_kernel(*refs, num_layers):
    # refs = (x_ref, w1_ref, shift1_ref, w2_ref, shift2_ref, ..., o_ref)
    # x_ref:        (B, d_in)        f32   VMEM
    # w_ref[l]:     (d_in_l, d_out_l) bf16 VMEM  (BN scale folded into columns)
    # shift_ref[l]: (1, d_out_l)     f32   VMEM  (folded Linear-bias + BN shift)
    # o_ref:        (B, d_out_last)  f32   VMEM
    x_ref = refs[0]
    o_ref = refs[-1]
    h = x_ref[...]  # f32
    for l in range(num_layers):
        w_ref = refs[1 + 2 * l]
        shift_ref = refs[2 + 2 * l]
        # bf16 MXU operands, f32 accumulation; epilogue (add + ReLU) stays f32.
        h = jnp.dot(h.astype(jnp.bfloat16), w_ref[...],
                    preferred_element_type=jnp.float32)
        h = jnp.maximum(h + shift_ref[...], 0.0)  # ReLU after every (Linear, BN)
    o_ref[...] = h.astype(o_ref.dtype)


class MLPParamsJAX:
    """Deterministic synthetic parameters for an MLP with layer heights [32, 64, 16]."""

    def __init__(self, key, heights):
        self.heights = heights
        self.layers = []
        for i in range(1, len(heights)):
            d_in, d_out = heights[i - 1], heights[i]
            key, kw, kb, kg, kbeta, km, kv = jax.random.split(key, 7)
            bound = 1.0 / jnp.sqrt(d_in)
            # PyTorch nn.Linear stores weight as (out, in); we keep (in, out) for x @ W.
            w = jax.random.uniform(kw, (d_in, d_out), jnp.float32, -bound, bound)
            b = jax.random.uniform(kb, (d_out,), jnp.float32, -bound, bound)
            gamma = 1.0 + 0.1 * jax.random.normal(kg, (d_out,), jnp.float32)
            beta = 0.1 * jax.random.normal(kbeta, (d_out,), jnp.float32)
            run_mean = 0.1 * jax.random.normal(km, (d_out,), jnp.float32)
            run_var = jnp.abs(jax.random.normal(kv, (d_out,), jnp.float32)) + 0.5
            self.layers.append((w, b, gamma, beta, run_mean, run_var))


def prepare_fused_mlp(params: MLPParamsJAX, B: int, eps: float = 1e-5):
    """One-time host-side prep: fold BN into W/shift (bf16 weights), build the
    single fused pallas_call with real (unpadded) shapes, return jitted forward(x)."""
    d_in = params.heights[0]
    d_out = params.heights[-1]
    num_layers = len(params.layers)

    flat_params = []
    in_specs = [pl.BlockSpec((B, d_in), lambda i: (0, 0))]
    flops = 0
    bytes_accessed = B * d_in * 4  # f32 input

    for (w, b, gamma, beta, mu, var) in params.layers:
        di, do = w.shape
        # Eval-mode BN fold:  BN(x@W + b) = x @ (W*s) + ((b - mu)*s + beta),
        # s = gamma / sqrt(var + eps).
        s = gamma * jax.lax.rsqrt(var + eps)
        w_folded = (w * s[None, :]).astype(jnp.bfloat16)            # MXU-native dtype
        shift = ((b - mu) * s + beta).astype(jnp.float32).reshape(1, do)

        flat_params += [w_folded, shift]
        # Full-array-dim blocks: satisfy the (8,128) rule without any padding.
        in_specs += [
            pl.BlockSpec((di, do), lambda i: (0, 0)),
            pl.BlockSpec((1, do), lambda i: (0, 0)),
        ]
        flops += 2 * B * di * do
        bytes_accessed += di * do * 2 + do * 4  # bf16 weight + f32 shift

    bytes_accessed += B * d_out * 4  # f32 output

    kernel = functools.partial(_fused_mlp_kernel, num_layers=num_layers)
    fused_call = pl.pallas_call(
        kernel,
        out_shape=jax.ShapeDtypeStruct((B, d_out), jnp.float32),
        grid_spec=pltpu.PrefetchScalarGridSpec(
            num_scalar_prefetch=0,
            grid=(1,),
            in_specs=in_specs,
            out_specs=pl.BlockSpec((B, d_out), lambda i: (0, 0)),
        ),
        compiler_params=pltpu.CompilerParams(
            dimension_semantics=("arbitrary",)),
        cost_estimate=pl.CostEstimate(
            flops=flops, transcendentals=0, bytes_accessed=bytes_accessed),
    )

    flat_params = tuple(flat_params)

    @jax.jit
    def forward(x):
        # Single op: no host-side padding or output slicing around the kernel.
        return fused_call(x.astype(jnp.float32), *flat_params)

    return forward


def mlp_reference(x, params: MLPParamsJAX, eps=1e-5):
    """Pure-JAX f32 reference (eval-mode PyTorch semantics) for validation."""
    for (w, b, gamma, beta, mu, var) in params.layers:
        y = x @ w + b
        y = (y - mu) / jnp.sqrt(var + eps) * gamma + beta
        x = jnp.maximum(y, 0.0)
    return x


if __name__ == "__main__":
    key = jax.random.PRNGKey(0)
    k_x, k_p = jax.random.split(key)

    # FCLayerParams heights: input=32, hidden=64, output=16  (>= 2 layers as required)
    heights = [32, 64, 16]
    B = 8
    params = MLPParamsJAX(k_p, heights)
    x = jax.random.normal(k_x, (B, heights[0]), jnp.float32)

    forward = prepare_fused_mlp(params, B)
    out = jax.block_until_ready(forward(x))

    ref = mlp_reference(x, params)
    assert out.shape == (B, heights[-1]), out.shape
    # bf16 MXU operands (f32 accumulation) -> loosened tolerance vs the f32 reference.
    assert jnp.allclose(out, ref, atol=5e-2, rtol=5e-2), float(
        jnp.max(jnp.abs(out - ref)))

    print("KERNEL_OK")
</pallas_src>

<mosaic_0001>
module attributes {stable_mosaic.version = 11 : i64} {
  func.func @_fused_mlp_kernel(%arg0: i32, %arg1: memref<8x32xf32, #tpu.memory_space<vmem>>, %arg2: memref<32x64xbf16, #tpu.memory_space<vmem>>, %arg3: memref<1x64xf32, #tpu.memory_space<vmem>>, %arg4: memref<64x16xbf16, #tpu.memory_space<vmem>>, %arg5: memref<1x16xf32, #tpu.memory_space<vmem>>, %arg6: memref<8x16xf32, #tpu.memory_space<vmem>>) attributes {dimension_semantics = [#tpu.dimension_semantics<arbitrary>], iteration_bounds = array<i64: 1>, scalar_prefetch = 0 : i64, scratch_operands = 0 : i64, tpu.core_type = #tpu.core_type<tc>, window_params = [{pipeline_mode = #tpu.pipeline_mode<synchronous>, transform_indices = @transform_0, window_bounds = array<i64: 8, 32>}, {pipeline_mode = #tpu.pipeline_mode<synchronous>, transform_indices = @transform_1, window_bounds = array<i64: 32, 64>}, {pipeline_mode = #tpu.pipeline_mode<synchronous>, transform_indices = @transform_2, window_bounds = array<i64: 1, 64>}, {pipeline_mode = #tpu.pipeline_mode<synchronous>, transform_indices = @transform_3, window_bounds = array<i64: 64, 16>}, {pipeline_mode = #tpu.pipeline_mode<synchronous>, transform_indices = @transform_4, window_bounds = array<i64: 1, 16>}, {pipeline_mode = #tpu.pipeline_mode<synchronous>, transform_indices = @transform_5, window_bounds = array<i64: 8, 16>}]} {
    %c0 = arith.constant 0 : index
    %c0_0 = arith.constant 0 : index
    %0 = vector.load %arg1[%c0, %c0_0] : memref<8x32xf32, #tpu.memory_space<vmem>>, vector<8x32xf32>
    %1 = arith.truncf %0 : vector<8x32xf32> to vector<8x32xbf16>
    %c0_1 = arith.constant 0 : index
    %c0_2 = arith.constant 0 : index
    %2 = vector.load %arg2[%c0_1, %c0_2] : memref<32x64xbf16, #tpu.memory_space<vmem>>, vector<32x64xbf16>
    %cst = arith.constant dense<0.000000e+00> : vector<8x64xf32>
    %3 = tpu.matmul %1, %2, %cst {dimension_numbers = #tpu.dot_dimension_numbers<[1], [0], [0], [1], [0, 0, 1, 1], [], []>} : vector<8x32xbf16>, vector<32x64xbf16>, vector<8x64xf32> -> vector<8x64xf32>
    %c0_3 = arith.constant 0 : index
    %c0_4 = arith.constant 0 : index
    %4 = vector.load %arg3[%c0_3, %c0_4] : memref<1x64xf32, #tpu.memory_space<vmem>>, vector<1x64xf32>
    %5 = vector.broadcast %4 : vector<1x64xf32> to vector<8x64xf32>
    %6 = arith.addf %3, %5 : vector<8x64xf32>
    %cst_5 = arith.constant 0.000000e+00 : f32
    %7 = vector.broadcast %cst_5 : f32 to vector<8x64xf32>
    %8 = arith.maximumf %6, %7 : vector<8x64xf32>
    %9 = arith.truncf %8 : vector<8x64xf32> to vector<8x64xbf16>
    %c0_6 = arith.constant 0 : index
    %c0_7 = arith.constant 0 : index
    %10 = vector.load %arg4[%c0_6, %c0_7] : memref<64x16xbf16, #tpu.memory_space<vmem>>, vector<64x16xbf16>
    %cst_8 = arith.constant dense<0.000000e+00> : vector<8x16xf32>
    %11 = tpu.matmul %9, %10, %cst_8 {dimension_numbers = #tpu.dot_dimension_numbers<[1], [0], [0], [1], [0, 0, 1, 1], [], []>} : vector<8x64xbf16>, vector<64x16xbf16>, vector<8x16xf32> -> vector<8x16xf32>
    %c0_9 = arith.constant 0 : index
    %c0_10 = arith.constant 0 : index
    %12 = vector.load %arg5[%c0_9, %c0_10] : memref<1x16xf32, #tpu.memory_space<vmem>>, vector<1x16xf32>
    %13 = vector.broadcast %12 : vector<1x16xf32> to vector<8x16xf32>
    %14 = arith.addf %11, %13 : vector<8x16xf32>
    %cst_11 = arith.constant 0.000000e+00 : f32
    %15 = vector.broadcast %cst_11 : f32 to vector<8x16xf32>
    %16 = arith.maximumf %14, %15 : vector<8x16xf32>
    %c0_12 = arith.constant 0 : index
    %c0_13 = arith.constant 0 : index
    %17 = vector.load %arg6[%c0_12, %c0_13] : memref<8x16xf32, #tpu.memory_space<vmem>>, vector<8x16xf32>
    tpu.vector_store %arg6[%c0_12, %c0_13], %16 {strides = array<i32>} : memref<8x16xf32, #tpu.memory_space<vmem>>, vector<8x16xf32>,
    return
  }
  func.func @transform_0(%arg0: i32) -> (i32, i32) {
    %c0_i32 = arith.constant 0 : i32
    %c0_i32_0 = arith.constant 0 : i32
    %c0_i32_1 = arith.constant 0 : i32
    return %c0_i32, %c0_i32_0 : i32, i32
  }
  func.func @transform_1(%arg0: i32) -> (i32, i32) {
    %c0_i32 = arith.constant 0 : i32
    %c0_i32_0 = arith.constant 0 : i32
    %c0_i32_1 = arith.constant 0 : i32
    return %c0_i32, %c0_i32_0 : i32, i32
  }
  func.func @transform_2(%arg0: i32) -> (i32, i32) {
    %c0_i32 = arith.constant 0 : i32
    %c0_i32_0 = arith.constant 0 : i32
    %c0_i32_1 = arith.constant 0 : i32
    return %c0_i32, %c0_i32_0 : i32, i32
  }
  func.func @transform_3(%arg0: i32) -> (i32, i32) {
    %c0_i32 = arith.constant 0 : i32
    %c0_i32_0 = arith.constant 0 : i32
    %c0_i32_1 = arith.constant 0 : i32
    return %c0_i32, %c0_i32_0 : i32, i32
  }
  func.func @transform_4(%arg0: i32) -> (i32, i32) {
    %c0_i32 = arith.constant 0 : i32
    %c0_i32_0 = arith.constant 0 : i32
    %c0_i32_1 = arith.constant 0 : i32
    return %c0_i32, %c0_i32_0 : i32, i32
  }
  func.func @transform_5(%arg0: i32) -> (i32, i32) {
    %c0_i32 = arith.constant 0 : i32
    %c0_i32_0 = arith.constant 0 : i32
    %c0_i32_1 = arith.constant 0 : i32
    return %c0_i32, %c0_i32_0 : i32, i32
  }
}

</mosaic_0001>

<llo_original>
// kernel: forward.1
$region0: #{forward.1}
  #allocation0 [shape = 'u32[]', space=smem, size = 0x4, offset = 0x4, fixed_abs, tag = 'smem constant byte address 0x4 - core index']
  #allocation1 [shape = 'u32[72,128]{1,0:T(1,128)}', space=vmem, size = 0x9000, scoped, tag = 'internal scratch']
  %s0 = inlined_call_operand.hbm [shape: f32[8,32], index: 0, kind: input, shape index: {}]
  %s1 = inlined_call_operand.hbm [shape: bf16[32,64], index: 1, kind: input, shape index: {}]
  %s2 = inlined_call_operand.hbm [shape: f32[1,64], index: 2, kind: input, shape index: {}]
  %s3 = inlined_call_operand.hbm [shape: bf16[64,16], index: 3, kind: input, shape index: {}]
  %s4 = inlined_call_operand.vmem [shape: f32[1,16], index: 4, kind: input, shape index: {}]
  %s5 = inlined_call_operand.hbm [shape: f32[8,16], index: 5, kind: output, shape index: {}]
  %s6 = sld [smem:[#allocation0]]
  $region46: #{forward.1} parent=0
    _
  %s8 = ssub.s32 1, %s6
  %s9 = scalar_select 0, %s8, %s6
  $region1: #{forward.1} parent=0
    #allocation2 [shape = 'u8[4096]{0}', space=vmem, size = 0x1000, scoped, tag = 'input window, operand 0, single buffered']
    #allocation3 [shape = 's32[1]{0}', space=sflag, size = 0x4, scoped, tag = 'scoped memory for forward.1']
    #allocation4 [shape = 's32[1]{0}', space=sflag, size = 0x4, scoped, tag = 'scoped memory for forward.1']
    #allocation5 [shape = 'u8[8192]{0}', space=vmem, size = 0x2000, scoped, tag = 'input window, operand 1, single buffered']
    #allocation6 [shape = 's32[1]{0}', space=sflag, size = 0x4, scoped, tag = 'scoped memory for forward.1']
    #allocation7 [shape = 'u8[512]{0}', space=vmem, size = 0x400, scoped, tag = 'input window, operand 2, single buffered']
    #allocation8 [shape = 'u8[16384]{0}', space=vmem, size = 0x4000, scoped, tag = 'input window, operand 3, single buffered']
    #allocation9 [shape = 's32[1]{0}', space=sflag, size = 0x4, scoped, tag = 'scoped memory for forward.1']
    #allocation10 [shape = 'u8[4096]{0}', space=vmem, size = 0x1000, scoped, tag = 'output window, operand 0, single buffered']
    %10 = vsyncpa [#allocation3], 0
    %11 = vsyncpa [#allocation6], 0
    %12 = vsyncpa [#allocation9], 0
    %13 = vsyncpa [#allocation4], 0
    // Predicated region
    $region2: #{forward.1} parent=1 // pred_check
      _
    $region3: #{forward.1} parent=1 // pred_check_branch
      %15 = sbr.rel (0) target = $region5
    $region4: #{forward.1} parent=1 // pred_region
      %17 = vsyncadd [#allocation3], 0
      %s19 = sshll.u32 %s0, 4
      %s20 = int_to_ptr.hbm [resolvable:$true] %s19
      %s21 = sshll.u32 [#allocation2], 4
      %s22 = int_to_ptr.vmem [resolvable:$true] %s21
      %24 = dma.hbm_to_vmem [thread:$0]  %s20, 128, %s22, [#allocation3]
    $region5: #{forward.1} parent=1 // pred_fallthru
      _
    // Predicated region
    $region6: #{forward.1} parent=1 // pred_check
      _
    $region7: #{forward.1} parent=1 // pred_check_branch
      %26 = sbr.rel (0) target = $region9
    $region8: #{forward.1} parent=1 // pred_region
      %28 = vsyncadd [#allocation6], 0
      %s29 = sshll.u32 %s1, 4
      %s30 = int_to_ptr.hbm [resolvable:$true] %s29
      %s31 = sshll.u32 [#allocation5], 4
      %s32 = int_to_ptr.vmem [resolvable:$true] %s31
      %37 = dma.hbm_to_vmem [thread:$0]  %s30, 256, %s32, [#allocation6], 64, 64, 4
    $region9: #{forward.1} parent=1 // pred_fallthru
      _
    // Predicated region
    $region10: #{forward.1} parent=1 // pred_check
      _
    $region11: #{forward.1} parent=1 // pred_check_branch
      %39 = sbr.rel (0) target = $region13
    $region12: #{forward.1} parent=1 // pred_region
      %41 = vsyncadd [#allocation6], 0
      %s43 = sshll.u32 %s2, 4
      %s44 = int_to_ptr.hbm [resolvable:$true] %s43
      %s45 = sshll.u32 [#allocation7], 4
      %s46 = int_to_ptr.vmem [resolvable:$true] %s45
      %48 = dma.hbm_to_vmem [thread:$0]  %s44, 16, %s46, [#allocation6]
    $region13: #{forward.1} parent=1 // pred_fallthru
      _
    // Predicated region
    $region14: #{forward.1} parent=1 // pred_check
      _
    $region15: #{forward.1} parent=1 // pred_check_branch
      %50 = sbr.rel (0) target = $region17
    $region16: #{forward.1} parent=1 // pred_region
      %52 = vsyncadd [#allocation9], 0
      %s53 = sshll.u32 %s3, 4
      %s54 = int_to_ptr.hbm [resolvable:$true] %s53
      %s55 = sshll.u32 [#allocation8], 4
      %s56 = int_to_ptr.vmem [resolvable:$true] %s55
      %61 = dma.hbm_to_vmem [thread:$0]  %s54, 512, %s56, [#allocation9], 64, 64, 4
    $region17: #{forward.1} parent=1 // pred_fallthru
      _
    // Predicated region
    $region18: #{forward.1} parent=1 // pred_check
      _
    $region19: #{forward.1} parent=1 // pred_check_branch
      %63 = sbr.rel (0) target = $region21
    $region20: #{forward.1} parent=1 // pred_region
      _
    $region21: #{forward.1} parent=1 // pred_fallthru
      _
    // Predicated region
    $region22: #{forward.1} parent=1 // pred_check
      _
    $region23: #{forward.1} parent=1 // pred_check_branch
      %65 = sbr.rel (0) target = $region25
    $region24: #{forward.1} parent=1 // pred_region
      %67 = dma.done [#allocation3], 128
    $region25: #{forward.1} parent=1 // pred_fallthru
      _
    // Predicated region
    $region26: #{forward.1} parent=1 // pred_check
      _
    $region27: #{forward.1} parent=1 // pred_check_branch
      %69 = sbr.rel (0) target = $region29
    $region28: #{forward.1} parent=1 // pred_region
      %71 = dma.done [#allocation6], 256
    $region29: #{forward.1} parent=1 // pred_fallthru
      _
    // Predicated region
    $region30: #{forward.1} parent=1 // pred_check
      _
    $region31: #{forward.1} parent=1 // pred_check_branch
      %73 = sbr.rel (0) target = $region33
    $region32: #{forward.1} parent=1 // pred_region
      %75 = dma.done [#allocation6], 16
    $region33: #{forward.1} parent=1 // pred_fallthru
      _
    // Predicated region
    $region34: #{forward.1} parent=1 // pred_check
      _
    $region35: #{forward.1} parent=1 // pred_check_branch
      %77 = sbr.rel (0) target = $region37
    $region36: #{forward.1} parent=1 // pred_region
      %79 = dma.done [#allocation9], 512
    $region37: #{forward.1} parent=1 // pred_fallthru
      _
    %v81 = vld [vmem:[#allocation2] sm:$0xff]
    %v82 = vpack.c.bf16 %v81, %v81
    %v83 = vld [vmem:[#allocation5] sm:$0xf]
    %v84 = vld [vmem:[#allocation5 + $0x4] sm:$0xf]
    %v85 = vld [vmem:[#allocation5 + $0x8] sm:$0xf]
    %v86 = vld [vmem:[#allocation5 + $0xc] sm:$0xf]
    %v87 = vld [vmem:[#allocation7] sm:$0x1]
    %v89 = vperm.slane %v87, 0
    %v95 = vunpack.c.l.b16 %v83
    %v96 = vunpack.c.l.b16 %v84
    %v97 = vunpack.c.l.b16 %v85
    %v98 = vunpack.c.l.b16 %v86
    %v99 = vpack.c.b16 %v96, %v95
    %v100 = vpack.c.b16 %v98, %v97
    %vm103 = vcmask 261120
    %v105 = vsel %vm103, %v82, 0
    %107 = vmatpush.bf16.msra.mxu0 0
    %108 = vmatpush.bf16.msra.mxu0 0
    %109 = vmatpush.bf16.msra.mxu0 0
    %110 = vmatpush.bf16.msra.mxu0 0
    %111 = vmatpush.bf16.msra.mxu0 0
    %112 = vmatpush.bf16.msra.mxu0 0
    %113 = vmatpush.bf16.msra.mxu0 %v100
    %114 = vmatpush.bf16.msra.mxu0 %v99
    %115 = vmatmul.bf16.gmra.mxu0 %v105
    %v116 = vpop.f32.mrf.mxu0
    %v117 = vadd.f32 %v89, %v116
    %v118 = vpop.f32.mrf.mxu0
    %119 = vdwg.mxu0
    %v120 = vmax.f32 %v117, 0.0
    %v121 = vpack.c.bf16 %v120, %v120
    %v122 = vld [vmem:[#allocation8] sm:$0xf]
    %v123 = vld [vmem:[#allocation8 + $0x4] sm:$0xf]
    %v124 = vld [vmem:[#allocation8 + $0x8] sm:$0xf]
    %v125 = vld [vmem:[#allocation8 + $0xc] sm:$0xf]
    %v126 = vld [vmem:[#allocation8 + $0x10] sm:$0xf]
    %v127 = vld [vmem:[#allocation8 + $0x14] sm:$0xf]
    %v128 = vld [vmem:[#allocation8 + $0x18] sm:$0xf]
    %v129 = vld [vmem:[#allocation8 + $0x1c] sm:$0xf]
    %v130 = vld [vmem:[%s4] sm:$0x1]
    %v132 = vperm.slane %v130, 0
    %v142 = vunpack.c.l.b16 %v122
    %v143 = vunpack.c.l.b16 %v123
    %v144 = vunpack.c.l.b16 %v124
    %v145 = vunpack.c.l.b16 %v125
    %v146 = vunpack.c.l.b16 %v126
    %v147 = vunpack.c.l.b16 %v127
    %v148 = vunpack.c.l.b16 %v128
    %v149 = vunpack.c.l.b16 %v129
    %v150 = vpack.c.b16 %v143, %v142
    %v151 = vpack.c.b16 %v145, %v144
    %v152 = vpack.c.b16 %v147, %v146
    %v153 = vpack.c.b16 %v149, %v148
    %vm158 = vcmask 523264
    %v160 = vsel %vm158, %v121, 0
    %162 = vmatpush.bf16.msra.mxu0 0
    %163 = vmatpush.bf16.msra.mxu0 0
    %164 = vmatpush.bf16.msra.mxu0 0
    %165 = vmatpush.bf16.msra.mxu0 0
    %166 = vmatpush.bf16.msra.mxu0 %v153
    %167 = vmatpush.bf16.msra.mxu0 %v152
    %168 = vmatpush.bf16.msra.mxu0 %v151
    %169 = vmatpush.bf16.msra.mxu0 %v150
    %170 = vmatmul.bf16.gmra.mxu0 %v160
    %v171 = vpop.f32.mrf.mxu0
    %v172 = vadd.f32 %v132, %v171
    %v173 = vpop.f32.mrf.mxu0
    %174 = vdwg.mxu0
    %v175 = vmax.f32 %v172, 0.0
    %vm176 = vcmask 130048
    %177 = vst.msk [vmem:[#allocation10] sm:$0xff] %vm176, %v175
    // Predicated region
    $region38: #{forward.1} parent=1 // pred_check
      _
    $region39: #{forward.1} parent=1 // pred_check_branch
      %179 = sbr.rel (0) target = $region41
    $region40: #{forward.1} parent=1 // pred_region
      %181 = vsyncadd [#allocation4], 0
      %s183 = sshll.u32 [#allocation10], 4
      %s184 = int_to_ptr.vmem [resolvable:$true] %s183
      %s185 = sshll.u32 %s5, 4
      %s186 = int_to_ptr.hbm [resolvable:$true] %s185
      %188 = dma.vmem_to_hbm [thread:$0]  %s184, 128, %s186, [#allocation4]
    $region41: #{forward.1} parent=1 // pred_fallthru
      _
    // Predicated region
    $region42: #{forward.1} parent=1 // pred_check
      _
    $region43: #{forward.1} parent=1 // pred_check_branch
      %190 = sbr.rel (0) target = $region45
    $region44: #{forward.1} parent=1 // pred_region
      %192 = dma.done [#allocation4], 128
    $region45: #{forward.1} parent=1 // pred_fallthru
      _
    %193 = vsyncpa [#allocation3], 1
    %194 = vsyncpa [#allocation6], 1
    %195 = vsyncpa [#allocation9], 1
    %196 = vsyncpa [#allocation4], 1

</llo_original>
